<compile_context>
chip_gen: v6e
topology: v6e:2x2x1
jax: 0.10.0
libtpu: 0.0.40
codegen_flags: <defaults>
</compile_context>

<pallas_src>
import functools

import jax
import jax.numpy as jnp
from jax import lax
from jax.experimental import pallas as pl
from jax.experimental.pallas import tpu as pltpu


# ------------------------------ Pallas kernel --------------------------------
def _mlp3d_kernel(x_ref, p_ref, o_ref, emb_ref, *,
                  d_in, multires, seed_every, k0, h1, layers,
                  use_leaky_relu, apply_tanh, n_sub, t_sub, dot_dtype):
    """Fused positional-embedding + MLP forward on one tile of points.

    x_ref : (8*(1+2*n_seeds), tile) f32, 8-row-aligned groups:
            [coords | sin(f_s0 x) | cos(f_s0 x) | sin(f_s1 x) | cos(f_s1 x) | ...]
    p_ref : (rows_pad, cols_pad) packed weights/biases (dot_dtype), layer 0
            repacked to match the scratch row order (bias folded at col d_in).
    o_ref : (out_dim, tile) f32
    emb_ref: (k0, t_sub) dot_dtype VMEM scratch -- staged embedding per sub-chunk.
    """
    # Per-grid-step setup: zero the scratch so padded rows contribute exactly 0
    # to the layer-0 dot, and plant the constant "ones" row that carries the
    # folded layer-0 bias.  (Done every grid step so each TensorCore's scratch
    # is initialized under megacore sharding.)
    emb_ref[...] = jnp.zeros_like(emb_ref)
    emb_ref[d_in:d_in + 1, :] = jnp.ones((1, t_sub), dtype=dot_dtype)

    # Hoist all (tiny) weights / biases out of the lane loop: a few vregs total.
    w0 = p_ref[0:h1, 0:k0]                                        # (h1, K0)
    wbs = [(p_ref[0:dout, col:col + din],
            p_ref[0:dout, col + din:col + din + 1])
           for (col, din, dout) in layers]

    def sub_chunk(c, carry):
        off = pl.multiple_of(c * t_sub, t_sub)
        sl = pl.ds(off, t_sub)

        # ---- positional embedding, staged into the aligned VMEM scratch ----
        coords = x_ref[0:d_in, sl]                                # f32
        emb_ref[0:d_in, :] = coords.astype(dot_dtype)
        s = co = None
        seeds = 0
        for j in range(multires):
            if j % seed_every == 0:
                # Fresh exact sin/cos seed (computed by XLA in the wrapper).
                base = 8 * (1 + 2 * seeds)
                s = x_ref[base:base + d_in, sl]
                co = x_ref[base + 8:base + 8 + d_in, sl]
                seeds += 1
            else:
                # Exact double-angle step (f32, VPU): f_j = 2 * f_{j-1}.
                s, co = 2.0 * s * co, co * co - s * s
            g = 8 * (1 + j)
            emb_ref[g:g + d_in, :] = s.astype(dot_dtype)
            emb_ref[g + d_in:g + 2 * d_in, :] = co.astype(dot_dtype)

        # ---- layer 0: ONE well-shaped MXU dot; bias folded via ones row ----
        x = jnp.dot(w0, emb_ref[...], preferred_element_type=jnp.float32)

        # ---- remaining layers: activation -> Linear (no act after the last) --
        for (w, b) in wbs:
            if use_leaky_relu:
                x = jnp.where(x > 0, x, 0.01 * x)                 # F.leaky_relu
            else:
                x = jnp.maximum(x, 0.0)                           # F.relu
            x = jnp.dot(w, x.astype(dot_dtype), preferred_element_type=jnp.float32)
            x = x + b.astype(jnp.float32)

        if apply_tanh:                                            # output_type == 'sdf'
            x = jnp.tanh(x)
        # 'occ' / 'logits': identity (dist.Bernoulli(logits=x).logits == x).
        o_ref[:, sl] = x.astype(o_ref.dtype)
        return carry

    lax.fori_loop(0, n_sub, sub_chunk, 0)


# ------------------------------ pallas_call wrapper ---------------------------
def mlp3d_pallas(x_rows, params, *, d_in, multires, seed_every, k0, h1, layers,
                 out_dim, use_leaky_relu, apply_tanh, dot_dtype,
                 tile_m=4096, min_grid_steps=2):
    """x_rows: (8*(1+2*n_seeds), R) f32; params: packed (rows_pad, cols_pad).
       Returns (out_dim, R) f32."""
    n_rows, R = x_rows.shape

    # Pad points only to the next multiple of 128 (ragged last grid block is
    # handled by Pallas; garbage lanes are lane-local and sliced off below).
    r128 = pl.cdiv(R, 128) * 128
    tile = max(128, min((int(tile_m) // 128) * 128, r128))
    # Keep >= min_grid_steps grid steps when there is enough work so the
    # "parallel" axis can shard across both TensorCores on v7x (the extra
    # ~0.35us step on single-TC chips is negligible at these sizes).
    if r128 >= 1024:
        cap = max(512, ((r128 // min_grid_steps) // 128) * 128)
        tile = min(tile, cap)
    t_sub = 256 if tile % 256 == 0 else 128       # inner lane sub-chunk width
    n_sub = tile // t_sub

    if r128 != R:
        x_rows = jnp.pad(x_rows, ((0, 0), (0, r128 - R)))
    grid = (pl.cdiv(r128, tile),)

    kernel = functools.partial(
        _mlp3d_kernel, d_in=d_in, multires=multires, seed_every=seed_every,
        k0=k0, h1=h1, layers=layers, use_leaky_relu=use_leaky_relu,
        apply_tanh=apply_tanh, n_sub=n_sub, t_sub=t_sub, dot_dtype=dot_dtype)

    # VMEM budget (double-buffered inputs/outputs + params + scratch) with headroom.
    dsz = jnp.dtype(dot_dtype).itemsize
    vmem_need = (2 * (n_rows * tile * 4 + out_dim * tile * 4
                      + params.size * params.dtype.itemsize)
                 + k0 * t_sub * dsz)
    vmem_limit = int(min(max(2 * vmem_need + (4 << 20), 16 << 20), 48 << 20))

    out = pl.pallas_call(
        kernel,
        out_shape=jax.ShapeDtypeStruct((out_dim, r128), jnp.float32),
        grid_spec=pltpu.PrefetchScalarGridSpec(
            num_scalar_prefetch=0,
            grid=grid,
            in_specs=[
                pl.BlockSpec((n_rows, tile), lambda i: (0, i)),   # points tile
                pl.BlockSpec(params.shape, lambda i: (0, 0)),     # all params, 1 block
            ],
            out_specs=pl.BlockSpec((out_dim, tile), lambda i: (0, i)),
            scratch_shapes=[pltpu.VMEM((k0, t_sub), dot_dtype)],  # staged embedding
        ),
        compiler_params=pltpu.CompilerParams(
            dimension_semantics=("parallel",),
            vmem_limit_bytes=vmem_limit),
    )(x_rows, params)

    return out[:, :R]


# ------------------------------- Module wrapper -------------------------------
class MLP3DPallas:
    def __init__(self, out_size, hidden_neurons, use_leaky_relu=False,
                 use_bias=True, multires=10, output_type="occ", move=False,
                 seed_every=5, tile_m=4096, mxu_bf16=True, key=None):
        self.d_in = 4 if move else 3
        assert 2 * self.d_in <= 8, "kernel packs each sin/cos pair into an 8-row group"
        self.multires = multires
        self.output_type = output_type
        self.use_leaky_relu = use_leaky_relu
        self.seed_every = max(1, min(seed_every, multires))
        self.tile_m = tile_m
        self.out_size = out_size
        # bf16 MXU operands (f32 accumulate) by default; set mxu_bf16=False for
        # full-f32 matmuls.  The recurrence / activations always stay f32.
        self.dot_dtype = jnp.bfloat16 if mxu_bf16 else jnp.float32

        # Log-sampled bands (exactly 2^j): the in-kernel double-angle recurrence
        # relies on consecutive frequencies differing by exactly 2x.
        self.freq_bands = 2.0 ** jnp.arange(multires, dtype=jnp.float32)
        self.seed_freq_idx = list(range(0, multires, self.seed_every))

        in_size = self.d_in * (1 + 2 * multires)   # include_input + sin/cos per freq
        dims = [in_size] + list(hidden_neurons) + [out_size]

        if key is None:
            key = jax.random.PRNGKey(0)
        self.weights, self.biases = [], []
        # Deterministic init mimicking torch.nn.Linear: U(-1/sqrt(fan_in), +...)
        for i in range(len(dims) - 1):
            key, kw, kb = jax.random.split(key, 3)
            bound = 1.0 / (dims[i] ** 0.5)
            w = jax.random.uniform(kw, (dims[i], dims[i + 1]), jnp.float32,
                                   -bound, bound)
            if use_bias:
                b = jax.random.uniform(kb, (dims[i + 1],), jnp.float32,
                                       -bound, bound)
            else:
                b = jnp.zeros((dims[i + 1],), jnp.float32)
            self.weights.append(w)
            self.biases.append(b)

        (self.params, self.k0, self.h1, self.layers_layout) = self._pack_params(
            self.weights, self.biases, self.d_in, self.multires, self.dot_dtype)

    @staticmethod
    def _pack_params(weights, biases, d_in, multires, dtype):
        """Pack all layers into one (rows_pad, cols_pad) buffer.

        Layer 0 is repacked to match the kernel's embedding-scratch row order
        (8-row groups: [coords|bias-ones|pad], then [sin_j|cos_j|pad] per freq),
        with its bias folded into column d_in.  Later layers start at
        128-lane-aligned columns with their bias in the column after W^T.
        """
        def up(v, m): return ((v + m - 1) // m) * m
        h1 = weights[0].shape[1]
        k0 = 8 * (1 + multires)
        rows_pad = up(max(w.shape[1] for w in weights), 8)

        layers_layout = []
        col = up(k0, 128)
        for w in weights[1:]:
            din, dout = w.shape
            layers_layout.append((col, din, dout))
            col = up(col + din + 1, 128)
        cols_pad = up(col, 128)

        P = jnp.zeros((rows_pad, cols_pad), jnp.float32)
        w0t = weights[0].T                      # (h1, in_size): [coords, sin0, cos0, ...]
        P = P.at[:h1, 0:d_in].set(w0t[:, 0:d_in])
        P = P.at[:h1, d_in].set(biases[0])      # folded bias -> multiplies ones row
        for j in range(multires):
            src = d_in * (1 + 2 * j)
            dst = 8 * (1 + j)
            P = P.at[:h1, dst:dst + 2 * d_in].set(w0t[:, src:src + 2 * d_in])
        for (colw, din, dout), w, b in zip(layers_layout, weights[1:], biases[1:]):
            P = P.at[:dout, colw:colw + din].set(w.T)
            P = P.at[:dout, colw + din].set(b)
        return P.astype(dtype), k0, h1, tuple(layers_layout)

    def _kernel_inputs(self, coords_flat):
        """(R, d_in) -> (8*(1+2*n_seeds), R): coords + sin/cos seeds, 8-row groups."""
        cT = coords_flat.T.astype(jnp.float32)                 # (d_in, R)
        pad = ((0, 8 - self.d_in), (0, 0))
        rows = [jnp.pad(cT, pad)]
        for j in self.seed_freq_idx:
            a = cT * self.freq_bands[j]
            rows.append(jnp.pad(jnp.sin(a), pad))
            rows.append(jnp.pad(jnp.cos(a), pad))
        return jnp.concatenate(rows, axis=0)

    def __call__(self, model_input):
        coords = model_input["coords"]                         # (B, N, d_in)
        B, N, _ = coords.shape
        x_rows = self._kernel_inputs(coords.reshape(B * N, self.d_in))
        out = mlp3d_pallas(
            x_rows, self.params,
            d_in=self.d_in, multires=self.multires, seed_every=self.seed_every,
            k0=self.k0, h1=self.h1, layers=self.layers_layout,
            out_dim=self.out_size, use_leaky_relu=self.use_leaky_relu,
            apply_tanh=(self.output_type == "sdf"),
            dot_dtype=self.dot_dtype, tile_m=self.tile_m)
        out = out.T.reshape(B, N, self.out_size)
        # TODO(synk): autograd w.r.t. coords (requires_grad_ in the PyTorch
        # forward) is training machinery, not part of this forward kernel.
        return {"model_in": coords, "model_out": out}

    # Pure-JAX f32 reference (mirrors the PyTorch module) for verification.
    def reference(self, model_input):
        coords = model_input["coords"].astype(jnp.float32)
        feats = [coords]
        for f in self.freq_bands:
            feats.append(jnp.sin(coords * f))
            feats.append(jnp.cos(coords * f))
        x = jnp.concatenate(feats, axis=-1)
        L = len(self.weights)
        for i, (w, b) in enumerate(zip(self.weights, self.biases)):
            x = x @ w + b
            if i < L - 1:
                x = jnp.where(x > 0, x, 0.01 * x) if self.use_leaky_relu \
                    else jnp.maximum(x, 0.0)
        if self.output_type == "sdf":
            x = jnp.tanh(x)
        return {"model_in": model_input["coords"], "model_out": x}


# ----------------------------------- main -------------------------------------
if __name__ == "__main__":
    key = jax.random.PRNGKey(0)
    k_coords, k_params = jax.random.split(key)

    B, N = 2, 128
    coords = jax.random.uniform(k_coords, (B, N, 3), jnp.float32, -1.0, 1.0)

    model = MLP3DPallas(
        out_size=1,
        hidden_neurons=[32, 32],
        use_leaky_relu=False,
        use_bias=True,
        multires=10,
        output_type="occ",
        move=False,
        key=k_params,
    )

    out = model({"coords": coords})
    jax.block_until_ready(out["model_out"])

    ref = model.reference({"coords": coords})
    # bf16 MXU operands with f32 accumulation: expected abs error ~1e-3 at these
    # weight/activation scales, so 2e-2 is a comfortable bound (use
    # mxu_bf16=False for bit-tight f32 matmuls).
    if not jnp.allclose(out["model_out"], ref["model_out"], atol=2e-2, rtol=2e-2):
        err = jnp.max(jnp.abs(out["model_out"] - ref["model_out"]))
        raise AssertionError(
            f"Pallas output mismatch vs JAX reference (max abs err {err})")

    print("KERNEL_OK")
</pallas_src>

<mosaic_0001>
module attributes {stable_mosaic.version = 11 : i64} {
  func.func @_mlp3d_kernel(%arg0: i32, %arg1: memref<40x256xf32, #tpu.memory_space<vmem>>, %arg2: memref<32x384xbf16, #tpu.memory_space<vmem>>, %arg3: memref<1x256xf32, #tpu.memory_space<vmem>>, %arg4: memref<88x256xbf16, #tpu.memory_space<vmem>>) attributes {dimension_semantics = [#tpu.dimension_semantics<parallel>], iteration_bounds = array<i64: 1>, scalar_prefetch = 0 : i64, scratch_operands = 1 : i64, tpu.core_type = #tpu.core_type<tc>, window_params = [{transform_indices = @transform_0, window_bounds = array<i64: 40, 256>}, {pipeline_mode = #tpu.pipeline_mode<synchronous>, transform_indices = @transform_1, window_bounds = array<i64: 32, 384>}, {transform_indices = @transform_2, window_bounds = array<i64: 1, 256>}]} {
    %cst = arith.constant 0.000000e+00 : bf16
    %0 = vector.broadcast %cst : bf16 to vector<88x256xbf16>
    %c0 = arith.constant 0 : index
    %c0_0 = arith.constant 0 : index
    %1 = vector.load %arg4[%c0, %c0_0] : memref<88x256xbf16, #tpu.memory_space<vmem>>, vector<88x256xbf16>
    tpu.vector_store %arg4[%c0, %c0_0], %0 {strides = array<i32>} : memref<88x256xbf16, #tpu.memory_space<vmem>>, vector<88x256xbf16>,
    %cst_1 = arith.constant 1.000000e+00 : bf16
    %2 = vector.broadcast %cst_1 : bf16 to vector<1x256xbf16>
    %c3 = arith.constant 3 : index
    %c0_2 = arith.constant 0 : index
    %3 = vector.load %arg4[%c3, %c0_2] : memref<88x256xbf16, #tpu.memory_space<vmem>>, vector<1x256xbf16>
    tpu.vector_store %arg4[%c3, %c0_2], %2 {strides = array<i32>} : memref<88x256xbf16, #tpu.memory_space<vmem>>, vector<1x256xbf16>,
    %c0_3 = arith.constant 0 : index
    %c0_4 = arith.constant 0 : index
    %4 = vector.load %arg2[%c0_3, %c0_4] : memref<32x384xbf16, #tpu.memory_space<vmem>>, vector<32x88xbf16>
    %c0_5 = arith.constant 0 : index
    %c128 = arith.constant 128 : index
    %5 = vector.load %arg2[%c0_5, %c128] : memref<32x384xbf16, #tpu.memory_space<vmem>>, vector<32x32xbf16>
    %c0_6 = arith.constant 0 : index
    %c160 = arith.constant 160 : index
    %6 = vector.load %arg2[%c0_6, %c160] : memref<32x384xbf16, #tpu.memory_space<vmem>>, vector<32x1xbf16>
    %c0_7 = arith.constant 0 : index
    %c256 = arith.constant 256 : index
    %7 = vector.load %arg2[%c0_7, %c256] : memref<32x384xbf16, #tpu.memory_space<vmem>>, vector<1x32xbf16>
    %c0_8 = arith.constant 0 : index
    %c288 = arith.constant 288 : index
    %8 = vector.load %arg2[%c0_8, %c288] : memref<32x384xbf16, #tpu.memory_space<vmem>>, vector<1x1xbf16>
    %c0_i32 = arith.constant 0 : i32
    %c256_i32 = arith.constant 256 : i32
    %9 = arith.muli %c0_i32, %c256_i32 : i32
    %10 = tpu.assume_multiple %9, 256 : i32
    %c0_9 = arith.constant 0 : index
    %11 = arith.index_cast %10 : i32 to index
    %12 = vector.load %arg1[%c0_9, %11] : memref<40x256xf32, #tpu.memory_space<vmem>>, vector<3x256xf32>
    %13 = arith.truncf %12 : vector<3x256xf32> to vector<3x256xbf16>
    %c0_10 = arith.constant 0 : index
    %c0_11 = arith.constant 0 : index
    %14 = vector.load %arg4[%c0_10, %c0_11] : memref<88x256xbf16, #tpu.memory_space<vmem>>, vector<3x256xbf16>
    tpu.vector_store %arg4[%c0_10, %c0_11], %13 {strides = array<i32>} : memref<88x256xbf16, #tpu.memory_space<vmem>>, vector<3x256xbf16>,
    %c8 = arith.constant 8 : index
    %15 = arith.index_cast %10 : i32 to index
    %16 = vector.load %arg1[%c8, %15] : memref<40x256xf32, #tpu.memory_space<vmem>>, vector<3x256xf32>
    %c16 = arith.constant 16 : index
    %17 = arith.index_cast %10 : i32 to index
    %18 = vector.load %arg1[%c16, %17] : memref<40x256xf32, #tpu.memory_space<vmem>>, vector<3x256xf32>
    %19 = arith.truncf %16 : vector<3x256xf32> to vector<3x256xbf16>
    %c8_12 = arith.constant 8 : index
    %c0_13 = arith.constant 0 : index
    %20 = vector.load %arg4[%c8_12, %c0_13] : memref<88x256xbf16, #tpu.memory_space<vmem>>, vector<3x256xbf16>
    tpu.vector_store %arg4[%c8_12, %c0_13], %19 {strides = array<i32>} : memref<88x256xbf16, #tpu.memory_space<vmem>>, vector<3x256xbf16>,
    %21 = arith.truncf %18 : vector<3x256xf32> to vector<3x256xbf16>
    %c11 = arith.constant 11 : index
    %c0_14 = arith.constant 0 : index
    %22 = vector.load %arg4[%c11, %c0_14] : memref<88x256xbf16, #tpu.memory_space<vmem>>, vector<3x256xbf16>
    tpu.vector_store %arg4[%c11, %c0_14], %21 {strides = array<i32>} : memref<88x256xbf16, #tpu.memory_space<vmem>>, vector<3x256xbf16>,
    %cst_15 = arith.constant 2.000000e+00 : f32
    %23 = vector.broadcast %cst_15 : f32 to vector<3x256xf32>
    %24 = arith.mulf %23, %16 : vector<3x256xf32>
    %25 = arith.mulf %24, %18 : vector<3x256xf32>
    %26 = arith.mulf %18, %18 : vector<3x256xf32>
    %27 = arith.mulf %16, %16 : vector<3x256xf32>
    %28 = arith.subf %26, %27 : vector<3x256xf32>
    %29 = arith.truncf %25 : vector<3x256xf32> to vector<3x256xbf16>
    %c16_16 = arith.constant 16 : index
    %c0_17 = arith.constant 0 : index
    %30 = vector.load %arg4[%c16_16, %c0_17] : memref<88x256xbf16, #tpu.memory_space<vmem>>, vector<3x256xbf16>
    tpu.vector_store %arg4[%c16_16, %c0_17], %29 {strides = array<i32>} : memref<88x256xbf16, #tpu.memory_space<vmem>>, vector<3x256xbf16>,
    %31 = arith.truncf %28 : vector<3x256xf32> to vector<3x256xbf16>
    %c19 = arith.constant 19 : index
    %c0_18 = arith.constant 0 : index
    %32 = vector.load %arg4[%c19, %c0_18] : memref<88x256xbf16, #tpu.memory_space<vmem>>, vector<3x256xbf16>
    tpu.vector_store %arg4[%c19, %c0_18], %31 {strides = array<i32>} : memref<88x256xbf16, #tpu.memory_space<vmem>>, vector<3x256xbf16>,
    %cst_19 = arith.constant 2.000000e+00 : f32
    %33 = vector.broadcast %cst_19 : f32 to vector<3x256xf32>
    %34 = arith.mulf %33, %25 : vector<3x256xf32>
    %35 = arith.mulf %34, %28 : vector<3x256xf32>
    %36 = arith.mulf %28, %28 : vector<3x256xf32>
    %37 = arith.mulf %25, %25 : vector<3x256xf32>
    %38 = arith.subf %36, %37 : vector<3x256xf32>
    %39 = arith.truncf %35 : vector<3x256xf32> to vector<3x256xbf16>
    %c24 = arith.constant 24 : index
    %c0_20 = arith.constant 0 : index
    %40 = vector.load %arg4[%c24, %c0_20] : memref<88x256xbf16, #tpu.memory_space<vmem>>, vector<3x256xbf16>
    tpu.vector_store %arg4[%c24, %c0_20], %39 {strides = array<i32>} : memref<88x256xbf16, #tpu.memory_space<vmem>>, vector<3x256xbf16>,
    %41 = arith.truncf %38 : vector<3x256xf32> to vector<3x256xbf16>
    %c27 = arith.constant 27 : index
    %c0_21 = arith.constant 0 : index
    %42 = vector.load %arg4[%c27, %c0_21] : memref<88x256xbf16, #tpu.memory_space<vmem>>, vector<3x256xbf16>
    tpu.vector_store %arg4[%c27, %c0_21], %41 {strides = array<i32>} : memref<88x256xbf16, #tpu.memory_space<vmem>>, vector<3x256xbf16>,
    %cst_22 = arith.constant 2.000000e+00 : f32
    %43 = vector.broadcast %cst_22 : f32 to vector<3x256xf32>
    %44 = arith.mulf %43, %35 : vector<3x256xf32>
    %45 = arith.mulf %44, %38 : vector<3x256xf32>
    %46 = arith.mulf %38, %38 : vector<3x256xf32>
    %47 = arith.mulf %35, %35 : vector<3x256xf32>
    %48 = arith.subf %46, %47 : vector<3x256xf32>
    %49 = arith.truncf %45 : vector<3x256xf32> to vector<3x256xbf16>
    %c32 = arith.constant 32 : index
    %c0_23 = arith.constant 0 : index
    %50 = vector.load %arg4[%c32, %c0_23] : memref<88x256xbf16, #tpu.memory_space<vmem>>, vector<3x256xbf16>
    tpu.vector_store %arg4[%c32, %c0_23], %49 {strides = array<i32>} : memref<88x256xbf16, #tpu.memory_space<vmem>>, vector<3x256xbf16>,
    %51 = arith.truncf %48 : vector<3x256xf32> to vector<3x256xbf16>
    %c35 = arith.constant 35 : index
    %c0_24 = arith.constant 0 : index
    %52 = vector.load %arg4[%c35, %c0_24] : memref<88x256xbf16, #tpu.memory_space<vmem>>, vector<3x256xbf16>
    tpu.vector_store %arg4[%c35, %c0_24], %51 {strides = array<i32>} : memref<88x256xbf16, #tpu.memory_space<vmem>>, vector<3x256xbf16>,
    %cst_25 = arith.constant 2.000000e+00 : f32
    %53 = vector.broadcast %cst_25 : f32 to vector<3x256xf32>
    %54 = arith.mulf %53, %45 : vector<3x256xf32>
    %55 = arith.mulf %54, %48 : vector<3x256xf32>
    %56 = arith.mulf %48, %48 : vector<3x256xf32>
    %57 = arith.mulf %45, %45 : vector<3x256xf32>
    %58 = arith.subf %56, %57 : vector<3x256xf32>
    %59 = arith.truncf %55 : vector<3x256xf32> to vector<3x256xbf16>
    %c40 = arith.constant 40 : index
    %c0_26 = arith.constant 0 : index
    %60 = vector.load %arg4[%c40, %c0_26] : memref<88x256xbf16, #tpu.memory_space<vmem>>, vector<3x256xbf16>
    tpu.vector_store %arg4[%c40, %c0_26], %59 {strides = array<i32>} : memref<88x256xbf16, #tpu.memory_space<vmem>>, vector<3x256xbf16>,
    %61 = arith.truncf %58 : vector<3x256xf32> to vector<3x256xbf16>
    %c43 = arith.constant 43 : index
    %c0_27 = arith.constant 0 : index
    %62 = vector.load %arg4[%c43, %c0_27] : memref<88x256xbf16, #tpu.memory_space<vmem>>, vector<3x256xbf16>
    tpu.vector_store %arg4[%c43, %c0_27], %61 {strides = array<i32>} : memref<88x256xbf16, #tpu.memory_space<vmem>>, vector<3x256xbf16>,
    %c24_28 = arith.constant 24 : index
    %63 = arith.index_cast %10 : i32 to index
    %64 = vector.load %arg1[%c24_28, %63] : memref<40x256xf32, #tpu.memory_space<vmem>>, vector<3x256xf32>
    %c32_29 = arith.constant 32 : index
    %65 = arith.index_cast %10 : i32 to index
    %66 = vector.load %arg1[%c32_29, %65] : memref<40x256xf32, #tpu.memory_space<vmem>>, vector<3x256xf32>
    %67 = arith.truncf %64 : vector<3x256xf32> to vector<3x256xbf16>
    %c48 = arith.constant 48 : index
    %c0_30 = arith.constant 0 : index
    %68 = vector.load %arg4[%c48, %c0_30] : memref<88x256xbf16, #tpu.memory_space<vmem>>, vector<3x256xbf16>
    tpu.vector_store %arg4[%c48, %c0_30], %67 {strides = array<i32>} : memref<88x256xbf16, #tpu.memory_space<vmem>>, vector<3x256xbf16>,
    %69 = arith.truncf %66 : vector<3x256xf32> to vector<3x256xbf16>
    %c51 = arith.constant 51 : index
    %c0_31 = arith.constant 0 : index
    %70 = vector.load %arg4[%c51, %c0_31] : memref<88x256xbf16, #tpu.memory_space<vmem>>, vector<3x256xbf16>
    tpu.vector_store %arg4[%c51, %c0_31], %69 {strides = array<i32>} : memref<88x256xbf16, #tpu.memory_space<vmem>>, vector<3x256xbf16>,
    %cst_32 = arith.constant 2.000000e+00 : f32
    %71 = vector.broadcast %cst_32 : f32 to vector<3x256xf32>
    %72 = arith.mulf %71, %64 : vector<3x256xf32>
    %73 = arith.mulf %72, %66 : vector<3x256xf32>
    %74 = arith.mulf %66, %66 : vector<3x256xf32>
    %75 = arith.mulf %64, %64 : vector<3x256xf32>
    %76 = arith.subf %74, %75 : vector<3x256xf32>
    %77 = arith.truncf %73 : vector<3x256xf32> to vector<3x256xbf16>
    %c56 = arith.constant 56 : index
    %c0_33 = arith.constant 0 : index
    %78 = vector.load %arg4[%c56, %c0_33] : memref<88x256xbf16, #tpu.memory_space<vmem>>, vector<3x256xbf16>
    tpu.vector_store %arg4[%c56, %c0_33], %77 {strides = array<i32>} : memref<88x256xbf16, #tpu.memory_space<vmem>>, vector<3x256xbf16>,
    %79 = arith.truncf %76 : vector<3x256xf32> to vector<3x256xbf16>
    %c59 = arith.constant 59 : index
    %c0_34 = arith.constant 0 : index
    %80 = vector.load %arg4[%c59, %c0_34] : memref<88x256xbf16, #tpu.memory_space<vmem>>, vector<3x256xbf16>
    tpu.vector_store %arg4[%c59, %c0_34], %79 {strides = array<i32>} : memref<88x256xbf16, #tpu.memory_space<vmem>>, vector<3x256xbf16>,
    %cst_35 = arith.constant 2.000000e+00 : f32
    %81 = vector.broadcast %cst_35 : f32 to vector<3x256xf32>
    %82 = arith.mulf %81, %73 : vector<3x256xf32>
    %83 = arith.mulf %82, %76 : vector<3x256xf32>
    %84 = arith.mulf %76, %76 : vector<3x256xf32>
    %85 = arith.mulf %73, %73 : vector<3x256xf32>
    %86 = arith.subf %84, %85 : vector<3x256xf32>
    %87 = arith.truncf %83 : vector<3x256xf32> to vector<3x256xbf16>
    %c64 = arith.constant 64 : index
    %c0_36 = arith.constant 0 : index
    %88 = vector.load %arg4[%c64, %c0_36] : memref<88x256xbf16, #tpu.memory_space<vmem>>, vector<3x256xbf16>
    tpu.vector_store %arg4[%c64, %c0_36], %87 {strides = array<i32>} : memref<88x256xbf16, #tpu.memory_space<vmem>>, vector<3x256xbf16>,
    %89 = arith.truncf %86 : vector<3x256xf32> to vector<3x256xbf16>
    %c67 = arith.constant 67 : index
    %c0_37 = arith.constant 0 : index
    %90 = vector.load %arg4[%c67, %c0_37] : memref<88x256xbf16, #tpu.memory_space<vmem>>, vector<3x256xbf16>
    tpu.vector_store %arg4[%c67, %c0_37], %89 {strides = array<i32>} : memref<88x256xbf16, #tpu.memory_space<vmem>>, vector<3x256xbf16>,
    %cst_38 = arith.constant 2.000000e+00 : f32
    %91 = vector.broadcast %cst_38 : f32 to vector<3x256xf32>
    %92 = arith.mulf %91, %83 : vector<3x256xf32>
    %93 = arith.mulf %92, %86 : vector<3x256xf32>
    %94 = arith.mulf %86, %86 : vector<3x256xf32>
    %95 = arith.mulf %83, %83 : vector<3x256xf32>
    %96 = arith.subf %94, %95 : vector<3x256xf32>
    %97 = arith.truncf %93 : vector<3x256xf32> to vector<3x256xbf16>
    %c72 = arith.constant 72 : index
    %c0_39 = arith.constant 0 : index
    %98 = vector.load %arg4[%c72, %c0_39] : memref<88x256xbf16, #tpu.memory_space<vmem>>, vector<3x256xbf16>
    tpu.vector_store %arg4[%c72, %c0_39], %97 {strides = array<i32>} : memref<88x256xbf16, #tpu.memory_space<vmem>>, vector<3x256xbf16>,
    %99 = arith.truncf %96 : vector<3x256xf32> to vector<3x256xbf16>
    %c75 = arith.constant 75 : index
    %c0_40 = arith.constant 0 : index
    %100 = vector.load %arg4[%c75, %c0_40] : memref<88x256xbf16, #tpu.memory_space<vmem>>, vector<3x256xbf16>
    tpu.vector_store %arg4[%c75, %c0_40], %99 {strides = array<i32>} : memref<88x256xbf16, #tpu.memory_space<vmem>>, vector<3x256xbf16>,
    %cst_41 = arith.constant 2.000000e+00 : f32
    %101 = vector.broadcast %cst_41 : f32 to vector<3x256xf32>
    %102 = arith.mulf %101, %93 : vector<3x256xf32>
    %103 = arith.mulf %102, %96 : vector<3x256xf32>
    %104 = arith.mulf %96, %96 : vector<3x256xf32>
    %105 = arith.mulf %93, %93 : vector<3x256xf32>
    %106 = arith.subf %104, %105 : vector<3x256xf32>
    %107 = arith.truncf %103 : vector<3x256xf32> to vector<3x256xbf16>
    %c80 = arith.constant 80 : index
    %c0_42 = arith.constant 0 : index
    %108 = vector.load %arg4[%c80, %c0_42] : memref<88x256xbf16, #tpu.memory_space<vmem>>, vector<3x256xbf16>
    tpu.vector_store %arg4[%c80, %c0_42], %107 {strides = array<i32>} : memref<88x256xbf16, #tpu.memory_space<vmem>>, vector<3x256xbf16>,
    %109 = arith.truncf %106 : vector<3x256xf32> to vector<3x256xbf16>
    %c83 = arith.constant 83 : index
    %c0_43 = arith.constant 0 : index
    %110 = vector.load %arg4[%c83, %c0_43] : memref<88x256xbf16, #tpu.memory_space<vmem>>, vector<3x256xbf16>
    tpu.vector_store %arg4[%c83, %c0_43], %109 {strides = array<i32>} : memref<88x256xbf16, #tpu.memory_space<vmem>>, vector<3x256xbf16>,
    %c0_44 = arith.constant 0 : index
    %c0_45 = arith.constant 0 : index
    %111 = vector.load %arg4[%c0_44, %c0_45] : memref<88x256xbf16, #tpu.memory_space<vmem>>, vector<88x256xbf16>
    %cst_46 = arith.constant dense<0.000000e+00> : vector<32x256xf32>
    %112 = tpu.matmul %4, %111, %cst_46 {dimension_numbers = #tpu.dot_dimension_numbers<[1], [0], [0], [1], [0, 0, 1, 1], [], []>} : vector<32x88xbf16>, vector<88x256xbf16>, vector<32x256xf32> -> vector<32x256xf32>
    %cst_47 = arith.constant 0.000000e+00 : f32
    %113 = vector.broadcast %cst_47 : f32 to vector<32x256xf32>
    %114 = arith.maximumf %112, %113 : vector<32x256xf32>
    %115 = arith.truncf %114 : vector<32x256xf32> to vector<32x256xbf16>
    %cst_48 = arith.constant dense<0.000000e+00> : vector<32x256xf32>
    %116 = tpu.matmul %5, %115, %cst_48 {dimension_numbers = #tpu.dot_dimension_numbers<[1], [0], [0], [1], [0, 0, 1, 1], [], []>} : vector<32x32xbf16>, vector<32x256xbf16>, vector<32x256xf32> -> vector<32x256xf32>
    %117 = arith.extf %6 : vector<32x1xbf16> to vector<32x1xf32>
    %118 = vector.broadcast %117 : vector<32x1xf32> to vector<32x256xf32>
    %119 = arith.addf %116, %118 : vector<32x256xf32>
    %cst_49 = arith.constant 0.000000e+00 : f32
    %120 = vector.broadcast %cst_49 : f32 to vector<32x256xf32>
    %121 = arith.maximumf %119, %120 : vector<32x256xf32>
    %122 = arith.truncf %121 : vector<32x256xf32> to vector<32x256xbf16>
    %cst_50 = arith.constant dense<0.000000e+00> : vector<1x256xf32>
    %123 = tpu.matmul %7, %122, %cst_50 {dimension_numbers = #tpu.dot_dimension_numbers<[1], [0], [0], [1], [0, 0, 1, 1], [], []>} : vector<1x32xbf16>, vector<32x256xbf16>, vector<1x256xf32> -> vector<1x256xf32>
    %124 = arith.extf %8 : vector<1x1xbf16> to vector<1x1xf32>
    %125 = vector.broadcast %124 : vector<1x1xf32> to vector<1x256xf32>
    %126 = arith.addf %123, %125 : vector<1x256xf32>
    %c0_51 = arith.constant 0 : index
    %127 = arith.index_cast %10 : i32 to index
    %128 = vector.load %arg3[%c0_51, %127] : memref<1x256xf32, #tpu.memory_space<vmem>>, vector<1x256xf32>
    tpu.vector_store %arg3[%c0_51, %127], %126 {strides = array<i32>} : memref<1x256xf32, #tpu.memory_space<vmem>>, vector<1x256xf32>,
    %c1_i32 = arith.constant 1 : i32
    return
  }
  func.func @transform_0(%arg0: i32) -> (i32, i32) {
    %c0_i32 = arith.constant 0 : i32
    %c0_i32_0 = arith.constant 0 : i32
    return %c0_i32, %arg0 : i32, i32
  }
  func.func @transform_1(%arg0: i32) -> (i32, i32) {
    %c0_i32 = arith.constant 0 : i32
    %c0_i32_0 = arith.constant 0 : i32
    %c0_i32_1 = arith.constant 0 : i32
    return %c0_i32, %c0_i32_0 : i32, i32
  }
  func.func @transform_2(%arg0: i32) -> (i32, i32) {
    %c0_i32 = arith.constant 0 : i32
    %c0_i32_0 = arith.constant 0 : i32
    return %c0_i32, %arg0 : i32, i32
  }
}

</mosaic_0001>

<llo_original>
// kernel: tpu_custom_call.1
$region0: #{tpu_custom_call.1}
  #allocation0 [shape = 'u32[]', space=smem, size = 0x4, offset = 0x4, fixed_abs, tag = 'smem constant byte address 0x4 - core index']
  #allocation1 [shape = 'u32[144,128]{1,0:T(1,128)}', space=vmem, size = 0x12000, scoped, tag = 'internal scratch']
  #allocation2 [shape = 'bf16[88,256]{1,0:T(8,128)(2,1)}', space=vmem, size = 0xb000, scoped, tag = 'scratch operand']
  %s0 = inlined_call_operand.hbm [shape: f32[40,256], index: 0, kind: input, shape index: {}]
  %s1 = inlined_call_operand.hbm [shape: bf16[32,384], index: 1, kind: input, shape index: {}]
  %s2 = inlined_call_operand.hbm [shape: f32[1,256], index: 2, kind: output, shape index: {}]
  %s3 = sld [smem:[#allocation0]]
  $region26: #{tpu_custom_call.1} parent=0
    _
  %s5 = ssub.s32 1, %s3
  %s6 = scalar_select 0, %s5, %s3
  $region1: #{tpu_custom_call.1} parent=0
    #allocation3 [shape = 'u8[40960]{0}', space=vmem, size = 0xa000, scoped, tag = 'input window, operand 0, single buffered']
    #allocation4 [shape = 's32[1]{0}', space=sflag, size = 0x4, scoped, tag = 'scoped memory for tpu_custom_call.1']
    #allocation5 [shape = 's32[1]{0}', space=sflag, size = 0x4, scoped, tag = 'scoped memory for tpu_custom_call.1']
    #allocation6 [shape = 'u8[24576]{0}', space=vmem, size = 0x6000, scoped, tag = 'input window, operand 1, single buffered']
    #allocation7 [shape = 's32[1]{0}', space=sflag, size = 0x4, scoped, tag = 'scoped memory for tpu_custom_call.1']
    #allocation8 [shape = 'u8[1024]{0}', space=vmem, size = 0x400, scoped, tag = 'output window, operand 0, single buffered']
    %7 = vsyncpa [#allocation4], 0
    %8 = vsyncpa [#allocation7], 0
    %9 = vsyncpa [#allocation5], 0
    // Predicated region
    $region2: #{tpu_custom_call.1} parent=1 // pred_check
      _
    $region3: #{tpu_custom_call.1} parent=1 // pred_check_branch
      %11 = sbr.rel (0) target = $region5
    $region4: #{tpu_custom_call.1} parent=1 // pred_region
      %s13 = ssub.s32 1280, 1280
      %14 = vsyncadd [#allocation4], %s13
      %s15 = sshll.u32 [#allocation3], 4
      %s16 = int_to_ptr.vmem [resolvable:$true] %s15
      %21 = dma.hbm_to_vmem [thread:$0]  %s0, 1280, %s16, [#allocation4], 256, 256, 16
    $region5: #{tpu_custom_call.1} parent=1 // pred_fallthru
      _
    // Predicated region
    $region6: #{tpu_custom_call.1} parent=1 // pred_check
      _
    $region7: #{tpu_custom_call.1} parent=1 // pred_check_branch
      %23 = sbr.rel (0) target = $region9
    $region8: #{tpu_custom_call.1} parent=1 // pred_region
      %s25 = ssub.s32 768, 768
      %26 = vsyncadd [#allocation7], %s25
      %s27 = sshll.u32 [#allocation6], 4
      %s28 = int_to_ptr.vmem [resolvable:$true] %s27
      %33 = dma.hbm_to_vmem [thread:$0]  %s1, 768, %s28, [#allocation7], 192, 192, 12
    $region9: #{tpu_custom_call.1} parent=1 // pred_fallthru
      _
    // Predicated region
    $region10: #{tpu_custom_call.1} parent=1 // pred_check
      _
    $region11: #{tpu_custom_call.1} parent=1 // pred_check_branch
      %35 = sbr.rel (0) target = $region13
    $region12: #{tpu_custom_call.1} parent=1 // pred_region
      %36 = dma.done [#allocation4], 1280
    $region13: #{tpu_custom_call.1} parent=1 // pred_fallthru
      _
    // Predicated region
    $region14: #{tpu_custom_call.1} parent=1 // pred_check
      _
    $region15: #{tpu_custom_call.1} parent=1 // pred_check_branch
      %38 = sbr.rel (0) target = $region17
    $region16: #{tpu_custom_call.1} parent=1 // pred_region
      %39 = dma.done [#allocation7], 768
    $region17: #{tpu_custom_call.1} parent=1 // pred_fallthru
      _
    %42 = vst [vmem:[#allocation2] sm:$0xff] 0
    %43 = vst [vmem:[#allocation2 + $0x8] sm:$0xff] 0
    %44 = vst [vmem:[#allocation2 + $0x10] sm:$0xff] 0
    %45 = vst [vmem:[#allocation2 + $0x18] sm:$0xff] 0
    %46 = vst [vmem:[#allocation2 + $0x20] sm:$0xff] 0
    %47 = vst [vmem:[#allocation2 + $0x28] sm:$0xff] 0
    %48 = vst [vmem:[#allocation2 + $0x30] sm:$0xff] 0
    %49 = vst [vmem:[#allocation2 + $0x38] sm:$0xff] 0
    %50 = vst [vmem:[#allocation2 + $0x40] sm:$0xff] 0
    %51 = vst [vmem:[#allocation2 + $0x48] sm:$0xff] 0
    %52 = vst [vmem:[#allocation2 + $0x50] sm:$0xff] 0
    %vm53 = vcmask 1041409
    %vm54 = vsmask.f32 7942
    %vm55 = vmand %vm53, %vm54
    %vm56 = vcmask 1045509
    %vm57 = vsmask.f32 7958
    %vm58 = vmand %vm56, %vm57
    %vm59 = vmor %vm58, %vm55
    %v60 = vld [vmem:[#allocation2] sm:$0x22]
    %v61 = vsel %vm59, 1065369472, %v60
    %62 = vst [vmem:[#allocation2] sm:$0x22] %v61
    %v63 = vld [vmem:[#allocation6] sm:$0xf]
    %v64 = vld [vmem:[#allocation6 + $0xc] sm:$0xf]
    %v65 = vld [vmem:[#allocation6 + $0x18] sm:$0xf]
    %v66 = vld [vmem:[#allocation6 + $0x24] sm:$0xf]
    %v67 = vld [vmem:[#allocation6 + $0x4] sm:$0xf]
    %v68 = vld [vmem:[#allocation6 + $0x10] sm:$0xf]
    %v69 = vld [vmem:[#allocation6 + $0x1c] sm:$0xf]
    %v70 = vld [vmem:[#allocation6 + $0x28] sm:$0xf]
    %v71 = vld [vmem:[#allocation6 + $0x8] sm:$0x1]
    %v72 = vld [vmem:[#allocation3] sm:$0x7]
    %v73 = vld [vmem:[#allocation3 + $0x8] sm:$0x7]
    %v74 = vpack.c.bf16 %v72, %v72
    %v75 = vpack.c.bf16 %v73, %v73
    %v78 = vunpack.c.l.b16 %v74
    %v79 = vunpack.c.l.b16 %v75
    %v80 = vpack.c.b16 %v79, %v78
    %vm82 = vcmask 1041408
    %vm83 = vsmask.f32 1280
    %vm84 = vmand %vm82, %vm83
    %vm85 = vcmask 1045508
    %vm86 = vsmask.f32 5376
    %vm87 = vmand %vm85, %vm86
    %vm88 = vmor %vm87, %vm84
    %v89 = vld [vmem:[#allocation2] sm:$0x33]
    %v90 = vsel %vm88, %v80, %v89
    %91 = vst [vmem:[#allocation2] sm:$0x33] %v90
    %v92 = vld [vmem:[#allocation3 + $0x10] sm:$0x7]
    %v93 = vld [vmem:[#allocation3 + $0x18] sm:$0x7]
    %v94 = vld [vmem:[#allocation3 + $0x20] sm:$0x7]
    %v95 = vld [vmem:[#allocation3 + $0x28] sm:$0x7]
    %v96 = vpack.c.bf16 %v92, %v92
    %v97 = vpack.c.bf16 %v93, %v93
    %v100 = vunpack.c.l.b16 %v96
    %v101 = vunpack.c.l.b16 %v97
    %v102 = vpack.c.b16 %v101, %v100
    %v104 = vld [vmem:[#allocation2 + $0x8] sm:$0x33]
    %v105 = vsel %vm88, %v102, %v104
    %106 = vst [vmem:[#allocation2 + $0x8] sm:$0x33] %v105
    %v107 = vpack.c.bf16 %v94, %v94
    %v108 = vpack.c.bf16 %v95, %v95
    %v111 = vunpack.c.l.b16 %v107
    %v112 = vunpack.c.l.b16 %v108
    %v113 = vpack.c.b16 %v112, %v111
    %v115 = vshrl.u32 %v113, 16
    %v117 = vrot.slane %v115, 6
    %v118 = vshll.u32 %v113, 16
    %v120 = vrot.slane %v118, 7
    %v121 = vor.u32 %v117, %v120
    %vm123 = vcmask 1042433
    %vm124 = vmand %vm123, %vm54
    %vm125 = vcmask 1046533
    %vm126 = vmand %vm125, %vm57
    %vm127 = vmor %vm126, %vm124
    %v128 = vld [vmem:[#allocation2 + $0x8] sm:$0x66]
    %v129 = vsel %vm127, %v121, %v128
    %130 = vst [vmem:[#allocation2 + $0x8] sm:$0x66] %v129
    %v131 = vmul.f32 %v92, 2.0
    %v132 = vmul.f32 %v93, 2.0
    %v133 = vmul.f32 %v131, %v94
    %v134 = vmul.f32 %v132, %v95
    %v135 = vmul.f32 %v94, %v94
    %v136 = vmul.f32 %v95, %v95
    %v137 = vmul.f32 %v92, %v92
    %v138 = vmul.f32 %v93, %v93
    %v139 = vsub.f32 %v135, %v137
    %v140 = vsub.f32 %v136, %v138
    %v141 = vpack.c.bf16 %v133, %v133
    %v142 = vpack.c.bf16 %v134, %v134
    %v145 = vunpack.c.l.b16 %v141
    %v146 = vunpack.c.l.b16 %v142
    %v147 = vpack.c.b16 %v146, %v145
    %v149 = vld [vmem:[#allocation2 + $0x10] sm:$0x33]
    %v150 = vsel %vm88, %v147, %v149
    %151 = vst [vmem:[#allocation2 + $0x10] sm:$0x33] %v150
    %v152 = vpack.c.bf16 %v139, %v139
    %v153 = vpack.c.bf16 %v140, %v140
    %v156 = vunpack.c.l.b16 %v152
    %v157 = vunpack.c.l.b16 %v153
    %v158 = vpack.c.b16 %v157, %v156
    %v160 = vshrl.u32 %v158, 16
    %v162 = vrot.slane %v160, 6
    %v163 = vshll.u32 %v158, 16
    %v165 = vrot.slane %v163, 7
    %v166 = vor.u32 %v162, %v165
    %v168 = vld [vmem:[#allocation2 + $0x10] sm:$0x66]
    %v169 = vsel %vm127, %v166, %v168
    %170 = vst [vmem:[#allocation2 + $0x10] sm:$0x66] %v169
    %v171 = vmul.f32 %v133, 2.0
    %v172 = vmul.f32 %v134, 2.0
    %v173 = vmul.f32 %v171, %v139
    %v174 = vmul.f32 %v172, %v140
    %v175 = vmul.f32 %v139, %v139
    %v176 = vmul.f32 %v140, %v140
    %v177 = vmul.f32 %v133, %v133
    %v178 = vmul.f32 %v134, %v134
    %v179 = vsub.f32 %v175, %v177
    %v180 = vsub.f32 %v176, %v178
    %v181 = vpack.c.bf16 %v173, %v173
    %v182 = vpack.c.bf16 %v174, %v174
    %v185 = vunpack.c.l.b16 %v181
    %v186 = vunpack.c.l.b16 %v182
    %v187 = vpack.c.b16 %v186, %v185
    %v189 = vld [vmem:[#allocation2 + $0x18] sm:$0x33]
    %v190 = vsel %vm88, %v187, %v189
    %191 = vst [vmem:[#allocation2 + $0x18] sm:$0x33] %v190
    %v192 = vpack.c.bf16 %v179, %v179
    %v193 = vpack.c.bf16 %v180, %v180
    %v196 = vunpack.c.l.b16 %v192
    %v197 = vunpack.c.l.b16 %v193
    %v198 = vpack.c.b16 %v197, %v196
    %v200 = vshrl.u32 %v198, 16
    %v202 = vrot.slane %v200, 6
    %v203 = vshll.u32 %v198, 16
    %v205 = vrot.slane %v203, 7
    %v206 = vor.u32 %v202, %v205
    %v208 = vld [vmem:[#allocation2 + $0x18] sm:$0x66]
    %v209 = vsel %vm127, %v206, %v208
    %210 = vst [vmem:[#allocation2 + $0x18] sm:$0x66] %v209
    %v211 = vmul.f32 %v173, 2.0
    %v212 = vmul.f32 %v174, 2.0
    %v213 = vmul.f32 %v211, %v179
    %v214 = vmul.f32 %v212, %v180
    %v215 = vmul.f32 %v179, %v179
    %v216 = vmul.f32 %v180, %v180
    %v217 = vmul.f32 %v173, %v173
    %v218 = vmul.f32 %v174, %v174
    %v219 = vsub.f32 %v215, %v217
    %v220 = vsub.f32 %v216, %v218
    %v221 = vpack.c.bf16 %v213, %v213
    %v222 = vpack.c.bf16 %v214, %v214
    %v225 = vunpack.c.l.b16 %v221
    %v226 = vunpack.c.l.b16 %v222
    %v227 = vpack.c.b16 %v226, %v225
    %v229 = vld [vmem:[#allocation2 + $0x20] sm:$0x33]
    %v230 = vsel %vm88, %v227, %v229
    %231 = vst [vmem:[#allocation2 + $0x20] sm:$0x33] %v230
    %v232 = vpack.c.bf16 %v219, %v219
    %v233 = vpack.c.bf16 %v220, %v220
    %v236 = vunpack.c.l.b16 %v232
    %v237 = vunpack.c.l.b16 %v233
    %v238 = vpack.c.b16 %v237, %v236
    %v240 = vshrl.u32 %v238, 16
    %v242 = vrot.slane %v240, 6
    %v243 = vshll.u32 %v238, 16
    %v245 = vrot.slane %v243, 7
    %v246 = vor.u32 %v242, %v245
    %v248 = vld [vmem:[#allocation2 + $0x20] sm:$0x66]
    %v249 = vsel %vm127, %v246, %v248
    %250 = vst [vmem:[#allocation2 + $0x20] sm:$0x66] %v249
    %v251 = vmul.f32 %v213, 2.0
    %v252 = vmul.f32 %v214, 2.0
    %v253 = vmul.f32 %v251, %v219
    %v254 = vmul.f32 %v252, %v220
    %v255 = vmul.f32 %v219, %v219
    %v256 = vmul.f32 %v220, %v220
    %v257 = vmul.f32 %v213, %v213
    %v258 = vmul.f32 %v214, %v214
    %v259 = vsub.f32 %v255, %v257
    %v260 = vsub.f32 %v256, %v258
    %v261 = vpack.c.bf16 %v253, %v253
    %v262 = vpack.c.bf16 %v254, %v254
    %v265 = vunpack.c.l.b16 %v261
    %v266 = vunpack.c.l.b16 %v262
    %v267 = vpack.c.b16 %v266, %v265
    %v269 = vld [vmem:[#allocation2 + $0x28] sm:$0x33]
    %v270 = vsel %vm88, %v267, %v269
    %271 = vst [vmem:[#allocation2 + $0x28] sm:$0x33] %v270
    %v272 = vpack.c.bf16 %v259, %v259
    %v273 = vpack.c.bf16 %v260, %v260
    %v276 = vunpack.c.l.b16 %v272
    %v277 = vunpack.c.l.b16 %v273
    %v278 = vpack.c.b16 %v277, %v276
    %v280 = vshrl.u32 %v278, 16
    %v282 = vrot.slane %v280, 6
    %v283 = vshll.u32 %v278, 16
    %v285 = vrot.slane %v283, 7
    %v286 = vor.u32 %v282, %v285
    %v288 = vld [vmem:[#allocation2 + $0x28] sm:$0x66]
    %v289 = vsel %vm127, %v286, %v288
    %290 = vst [vmem:[#allocation2 + $0x28] sm:$0x66] %v289
    %v291 = vld [vmem:[#allocation3 + $0x30] sm:$0x7]
    %v292 = vld [vmem:[#allocation3 + $0x38] sm:$0x7]
    %v293 = vld [vmem:[#allocation3 + $0x40] sm:$0x7]
    %v294 = vld [vmem:[#allocation3 + $0x48] sm:$0x7]
    %v295 = vpack.c.bf16 %v291, %v291
    %v296 = vpack.c.bf16 %v292, %v292
    %v299 = vunpack.c.l.b16 %v295
    %v300 = vunpack.c.l.b16 %v296
    %v301 = vpack.c.b16 %v300, %v299
    %v303 = vld [vmem:[#allocation2 + $0x30] sm:$0x33]
    %v304 = vsel %vm88, %v301, %v303
    %305 = vst [vmem:[#allocation2 + $0x30] sm:$0x33] %v304
    %v306 = vpack.c.bf16 %v293, %v293
    %v307 = vpack.c.bf16 %v294, %v294
    %v310 = vunpack.c.l.b16 %v306
    %v311 = vunpack.c.l.b16 %v307
    %v312 = vpack.c.b16 %v311, %v310
    %v314 = vshrl.u32 %v312, 16
    %v316 = vrot.slane %v314, 6
    %v317 = vshll.u32 %v312, 16
    %v319 = vrot.slane %v317, 7
    %v320 = vor.u32 %v316, %v319
    %v322 = vld [vmem:[#allocation2 + $0x30] sm:$0x66]
    %v323 = vsel %vm127, %v320, %v322
    %324 = vst [vmem:[#allocation2 + $0x30] sm:$0x66] %v323
    %v325 = vmul.f32 %v291, 2.0
    %v326 = vmul.f32 %v292, 2.0
    %v327 = vmul.f32 %v325, %v293
    %v328 = vmul.f32 %v326, %v294
    %v329 = vmul.f32 %v293, %v293
    %v330 = vmul.f32 %v294, %v294
    %v331 = vmul.f32 %v291, %v291
    %v332 = vmul.f32 %v292, %v292
    %v333 = vsub.f32 %v329, %v331
    %v334 = vsub.f32 %v330, %v332
    %v335 = vpack.c.bf16 %v327, %v327
    %v336 = vpack.c.bf16 %v328, %v328
    %v339 = vunpack.c.l.b16 %v335
    %v340 = vunpack.c.l.b16 %v336
    %v341 = vpack.c.b16 %v340, %v339
    %v343 = vld [vmem:[#allocation2 + $0x38] sm:$0x33]
    %v344 = vsel %vm88, %v341, %v343
    %345 = vst [vmem:[#allocation2 + $0x38] sm:$0x33] %v344
    %v346 = vpack.c.bf16 %v333, %v333
    %v347 = vpack.c.bf16 %v334, %v334
    %v350 = vunpack.c.l.b16 %v346
    %v351 = vunpack.c.l.b16 %v347
    %v352 = vpack.c.b16 %v351, %v350
    %v354 = vshrl.u32 %v352, 16
    %v356 = vrot.slane %v354, 6
    %v357 = vshll.u32 %v352, 16
    %v359 = vrot.slane %v357, 7
    %v360 = vor.u32 %v356, %v359
    %v362 = vld [vmem:[#allocation2 + $0x38] sm:$0x66]
    %v363 = vsel %vm127, %v360, %v362
    %364 = vst [vmem:[#allocation2 + $0x38] sm:$0x66] %v363
    %v365 = vmul.f32 %v327, 2.0
    %v366 = vmul.f32 %v328, 2.0
    %v367 = vmul.f32 %v365, %v333
    %v368 = vmul.f32 %v366, %v334
    %v369 = vmul.f32 %v333, %v333
    %v370 = vmul.f32 %v334, %v334
    %v371 = vmul.f32 %v327, %v327
    %v372 = vmul.f32 %v328, %v328
    %v373 = vsub.f32 %v369, %v371
    %v374 = vsub.f32 %v370, %v372
    %v375 = vpack.c.bf16 %v367, %v367
    %v376 = vpack.c.bf16 %v368, %v368
    %v379 = vunpack.c.l.b16 %v375
    %v380 = vunpack.c.l.b16 %v376
    %v381 = vpack.c.b16 %v380, %v379
    %v383 = vld [vmem:[#allocation2 + $0x40] sm:$0x33]
    %v384 = vsel %vm88, %v381, %v383
    %385 = vst [vmem:[#allocation2 + $0x40] sm:$0x33] %v384
    %v386 = vpack.c.bf16 %v373, %v373
    %v387 = vpack.c.bf16 %v374, %v374
    %v390 = vunpack.c.l.b16 %v386
    %v391 = vunpack.c.l.b16 %v387
    %v392 = vpack.c.b16 %v391, %v390
    %v394 = vshrl.u32 %v392, 16
    %v396 = vrot.slane %v394, 6
    %v397 = vshll.u32 %v392, 16
    %v399 = vrot.slane %v397, 7
    %v400 = vor.u32 %v396, %v399
    %v402 = vld [vmem:[#allocation2 + $0x40] sm:$0x66]
    %v403 = vsel %vm127, %v400, %v402
    %404 = vst [vmem:[#allocation2 + $0x40] sm:$0x66] %v403
    %v405 = vmul.f32 %v367, 2.0
    %v406 = vmul.f32 %v368, 2.0
    %v407 = vmul.f32 %v405, %v373
    %v408 = vmul.f32 %v406, %v374
    %v409 = vmul.f32 %v373, %v373
    %v410 = vmul.f32 %v374, %v374
    %v411 = vmul.f32 %v367, %v367
    %v412 = vmul.f32 %v368, %v368
    %v413 = vsub.f32 %v409, %v411
    %v414 = vsub.f32 %v410, %v412
    %v415 = vpack.c.bf16 %v407, %v407
    %v416 = vpack.c.bf16 %v408, %v408
    %v419 = vunpack.c.l.b16 %v415
    %v420 = vunpack.c.l.b16 %v416
    %v421 = vpack.c.b16 %v420, %v419
    %v423 = vld [vmem:[#allocation2 + $0x48] sm:$0x33]
    %v424 = vsel %vm88, %v421, %v423
    %425 = vst [vmem:[#allocation2 + $0x48] sm:$0x33] %v424
    %v426 = vpack.c.bf16 %v413, %v413
    %v427 = vpack.c.bf16 %v414, %v414
    %v430 = vunpack.c.l.b16 %v426
    %v431 = vunpack.c.l.b16 %v427
    %v432 = vpack.c.b16 %v431, %v430
    %v434 = vshrl.u32 %v432, 16
    %v436 = vrot.slane %v434, 6
    %v437 = vshll.u32 %v432, 16
    %v439 = vrot.slane %v437, 7
    %v440 = vor.u32 %v436, %v439
    %v442 = vld [vmem:[#allocation2 + $0x48] sm:$0x66]
    %v443 = vsel %vm127, %v440, %v442
    %444 = vst [vmem:[#allocation2 + $0x48] sm:$0x66] %v443
    %v445 = vmul.f32 %v407, 2.0
    %v446 = vmul.f32 %v408, 2.0
    %v447 = vmul.f32 %v445, %v413
    %v448 = vmul.f32 %v446, %v414
    %v449 = vmul.f32 %v413, %v413
    %v450 = vmul.f32 %v414, %v414
    %v451 = vmul.f32 %v407, %v407
    %v452 = vmul.f32 %v408, %v408
    %v453 = vsub.f32 %v449, %v451
    %v454 = vsub.f32 %v450, %v452
    %v455 = vpack.c.bf16 %v447, %v447
    %v456 = vpack.c.bf16 %v448, %v448
    %v459 = vunpack.c.l.b16 %v455
    %v460 = vunpack.c.l.b16 %v456
    %v461 = vpack.c.b16 %v460, %v459
    %v463 = vld [vmem:[#allocation2 + $0x50] sm:$0x33]
    %v464 = vsel %vm88, %v461, %v463
    %465 = vst [vmem:[#allocation2 + $0x50] sm:$0x33] %v464
    %v466 = vpack.c.bf16 %v453, %v453
    %v467 = vpack.c.bf16 %v454, %v454
    %v470 = vunpack.c.l.b16 %v466
    %v471 = vunpack.c.l.b16 %v467
    %v472 = vpack.c.b16 %v471, %v470
    %v474 = vshrl.u32 %v472, 16
    %v476 = vrot.slane %v474, 6
    %v477 = vshll.u32 %v472, 16
    %v479 = vrot.slane %v477, 7
    %v480 = vor.u32 %v476, %v479
    %v482 = vld [vmem:[#allocation2 + $0x50] sm:$0x66]
    %v483 = vsel %vm127, %v480, %v482
    %484 = vst [vmem:[#allocation2 + $0x50] sm:$0x66] %v483
    %v485 = vld [vmem:[#allocation2] sm:$0xff]
    %v486 = vld [vmem:[#allocation2 + $0x8] sm:$0xff]
    %v487 = vld [vmem:[#allocation2 + $0x10] sm:$0xff]
    %v488 = vld [vmem:[#allocation2 + $0x18] sm:$0xff]
    %v489 = vld [vmem:[#allocation2 + $0x20] sm:$0xff]
    %v490 = vld [vmem:[#allocation2 + $0x28] sm:$0xff]
    %v491 = vld [vmem:[#allocation2 + $0x30] sm:$0xff]
    %v492 = vld [vmem:[#allocation2 + $0x38] sm:$0xff]
    %v493 = vld [vmem:[#allocation2 + $0x40] sm:$0xff]
    %v494 = vld [vmem:[#allocation2 + $0x48] sm:$0xff]
    %v495 = vld [vmem:[#allocation2 + $0x50] sm:$0xff]
    %v500 = vunpack.c.l.b16 %v63
    %v501 = vunpack.c.l.b16 %v64
    %v502 = vunpack.c.l.b16 %v65
    %v503 = vunpack.c.l.b16 %v66
    %v504 = vpack.c.b16 %v501, %v500
    %v505 = vpack.c.b16 %v503, %v502
    %v517 = vunpack.c.l.b16 %v485
    %v518 = vunpack.c.h.b16 %v485
    %v519 = vunpack.c.l.b16 %v486
    %v520 = vunpack.c.h.b16 %v486
    %v521 = vunpack.c.l.b16 %v487
    %v522 = vunpack.c.h.b16 %v487
    %v523 = vunpack.c.l.b16 %v488
    %v524 = vunpack.c.h.b16 %v488
    %v525 = vunpack.c.l.b16 %v489
    %v526 = vunpack.c.h.b16 %v489
    %v527 = vunpack.c.l.b16 %v490
    %v528 = vunpack.c.h.b16 %v490
    %v529 = vunpack.c.l.b16 %v491
    %v530 = vunpack.c.h.b16 %v491
    %v531 = vunpack.c.l.b16 %v492
    %v532 = vunpack.c.h.b16 %v492
    %v533 = vunpack.c.l.b16 %v493
    %v534 = vunpack.c.h.b16 %v493
    %v535 = vunpack.c.l.b16 %v494
    %v536 = vunpack.c.h.b16 %v494
    %v537 = vunpack.c.l.b16 %v495
    %v538 = vunpack.c.h.b16 %v495
    %v539 = vpack.c.b16 %v519, %v517
    %v540 = vpack.c.b16 %v520, %v518
    %v541 = vpack.c.b16 %v523, %v521
    %v542 = vpack.c.b16 %v524, %v522
    %v543 = vpack.c.b16 %v527, %v525
    %v544 = vpack.c.b16 %v528, %v526
    %v545 = vpack.c.b16 %v531, %v529
    %v546 = vpack.c.b16 %v532, %v530
    %v547 = vpack.c.b16 %v535, %v533
    %v548 = vpack.c.b16 %v536, %v534
    %v549 = vpack.c.b16 %v537, %v537
    %v550 = vpack.c.b16 %v538, %v538
    %vm561 = vcmask 719872
    %v563 = vsel %vm561, %v504, 0
    %v566 = vsel %vm561, %v505, 0
    %vm568 = vcmask 1043456
    %v570 = vsel %vm568, %v549, 0
    %v573 = vsel %vm568, %v550, 0
    %575 = vmatprep.subr.bf16.mxu0 0
    %576 = vmatpush1.bf16.msra.mxu0 0
    %577 = vmatprep.subr.bf16.mxu0 0
    %578 = vmatpush1.bf16.msra.mxu0 0
    %579 = vmatprep.subr.bf16.mxu0 %v573
    %580 = vmatpush1.bf16.msra.mxu0 %v570
    %581 = vmatprep.subr.bf16.mxu0 %v548
    %582 = vmatpush1.bf16.msra.mxu0 %v547
    %583 = vmatprep.subr.bf16.mxu0 %v546
    %584 = vmatpush1.bf16.msra.mxu0 %v545
    %585 = vmatprep.subr.bf16.mxu0 %v544
    %586 = vmatpush1.bf16.msra.mxu0 %v543
    %587 = vmatprep.subr.bf16.mxu0 %v542
    %588 = vmatpush1.bf16.msra.mxu0 %v541
    %589 = vmatprep.subr.bf16.mxu0 %v540
    %590 = vmatpush1.bf16.msra.mxu0 %v539
    %591 = vmatprep.subr.bf16.mxu0 0
    %592 = vmatpush2.bf16.msra.mxu0 0
    %593 = vmatprep.subr.bf16.mxu0 0
    %594 = vmatpush2.bf16.msra.mxu0 0
    %595 = vmatprep.subr.bf16.mxu0 0
    %596 = vmatpush2.bf16.msra.mxu0 0
    %597 = vmatprep.subr.bf16.mxu0 0
    %598 = vmatpush2.bf16.msra.mxu0 0
    %599 = vmatprep.subr.bf16.mxu0 0
    %600 = vmatpush2.bf16.msra.mxu0 0
    %601 = vmatprep.subr.bf16.mxu0 0
    %602 = vmatpush2.bf16.msra.mxu0 0
    %603 = vmatprep.subr.bf16.mxu0 0
    %604 = vmatpush2.bf16.msra.mxu0 0
    %605 = vmatprep.subr.bf16.mxu0 0
    %606 = vmatpush2.bf16.msra.mxu0 0
    %607 = vmatprep.mubr.bf16.mxu0 0
    %608 = vmatmul.mubr.bf16.gmra.mxu0 %v563
    %v609 = vpop.f32.mrf.mxu0
    %v610 = vadd.f32 0.0, %v609
    %v611 = vpop.f32.mrf.mxu0
    %v612 = vadd.f32 0.0, %v611
    %v613 = vpop.f32.mrf.mxu0
    %v614 = vadd.f32 0.0, %v613
    %v615 = vpop.f32.mrf.mxu0
    %v616 = vadd.f32 0.0, %v615
    %617 = vmatprep.mubr.bf16.mxu0 0
    %618 = vmatmul.mubr.bf16.gmra.mxu0 %v566
    %v619 = vpop.f32.mrf.mxu0
    %v620 = vadd.f32 0.0, %v619
    %v621 = vpop.f32.mrf.mxu0
    %v622 = vadd.f32 0.0, %v621
    %v623 = vpop.f32.mrf.mxu0
    %v624 = vadd.f32 0.0, %v623
    %v625 = vpop.f32.mrf.mxu0
    %v626 = vadd.f32 0.0, %v625
    %627 = vdwg.mxu0
    %v628 = vmax.f32 %v610, 0.0
    %v629 = vmax.f32 %v612, 0.0
    %v630 = vmax.f32 %v614, 0.0
    %v631 = vmax.f32 %v616, 0.0
    %v632 = vmax.f32 %v620, 0.0
    %v633 = vmax.f32 %v622, 0.0
    %v634 = vmax.f32 %v624, 0.0
    %v635 = vmax.f32 %v626, 0.0
    %v636 = vpack.c.bf16 %v630, %v628
    %v637 = vpack.c.bf16 %v631, %v629
    %v638 = vpack.c.bf16 %v634, %v632
    %v639 = vpack.c.bf16 %v635, %v633
    %v640 = vunpack.c.l.bf16 %v67
    %v641 = vunpack.c.l.bf16 %v68
    %v642 = vunpack.c.l.bf16 %v69
    %v643 = vunpack.c.l.bf16 %v70
    %645 = vset.pattern.permute.xlu0 32
    %646 = vperm.xlu0 %645, %v640
    %v647 = vpop.permute.xlu0 %646
    %650 = vset.pattern.permute.xlu0 32
    %651 = vperm.xlu0 %650, %v641
    %v652 = vpop.permute.xlu0 %651
    %655 = vset.pattern.permute.xlu0 32
    %656 = vperm.xlu0 %655, %v642
    %v657 = vpop.permute.xlu0 %656
    %660 = vset.pattern.permute.xlu0 32
    %661 = vperm.xlu0 %660, %v643
    %v662 = vpop.permute.xlu0 %661
    %v668 = vunpack.c.l.b16 %v67
    %v669 = vunpack.c.l.b16 %v68
    %v670 = vunpack.c.l.b16 %v69
    %v671 = vunpack.c.l.b16 %v70
    %v672 = vpack.c.b16 %v669, %v668
    %v673 = vpack.c.b16 %v671, %v670
    %vm674 = vcmask 261120
    %v676 = vsel %vm674, %v672, 0
    %v679 = vsel %vm674, %v673, 0
    %681 = vmatprep.subr.bf16.mxu0 0
    %682 = vmatpush1.bf16.msra.mxu0 0
    %683 = vmatprep.subr.bf16.mxu0 0
    %684 = vmatpush1.bf16.msra.mxu0 0
    %685 = vmatprep.subr.bf16.mxu0 0
    %686 = vmatpush1.bf16.msra.mxu0 0
    %687 = vmatprep.subr.bf16.mxu0 0
    %688 = vmatpush1.bf16.msra.mxu0 0
    %689 = vmatprep.subr.bf16.mxu0 0
    %690 = vmatpush1.bf16.msra.mxu0 0
    %691 = vmatprep.subr.bf16.mxu0 0
    %692 = vmatpush1.bf16.msra.mxu0 0
    %693 = vmatprep.subr.bf16.mxu0 %v639
    %694 = vmatpush1.bf16.msra.mxu0 %v638
    %695 = vmatprep.subr.bf16.mxu0 %v637
    %696 = vmatpush1.bf16.msra.mxu0 %v636
    %697 = vmatprep.subr.bf16.mxu0 0
    %698 = vmatpush2.bf16.msra.mxu0 0
    %699 = vmatprep.subr.bf16.mxu0 0
    %700 = vmatpush2.bf16.msra.mxu0 0
    %701 = vmatprep.subr.bf16.mxu0 0
    %702 = vmatpush2.bf16.msra.mxu0 0
    %703 = vmatprep.subr.bf16.mxu0 0
    %704 = vmatpush2.bf16.msra.mxu0 0
    %705 = vmatprep.subr.bf16.mxu0 0
    %706 = vmatpush2.bf16.msra.mxu0 0
    %707 = vmatprep.subr.bf16.mxu0 0
    %708 = vmatpush2.bf16.msra.mxu0 0
    %709 = vmatprep.subr.bf16.mxu0 0
    %710 = vmatpush2.bf16.msra.mxu0 0
    %711 = vmatprep.subr.bf16.mxu0 0
    %712 = vmatpush2.bf16.msra.mxu0 0
    %713 = vmatprep.mubr.bf16.mxu0 0
    %714 = vmatmul.mubr.bf16.gmra.mxu0 %v676
    %v715 = vpop.f32.mrf.mxu0
    %v716 = vadd.f32 %v647, %v715
    %v717 = vpop.f32.mrf.mxu0
    %v718 = vadd.f32 %v647, %v717
    %v719 = vpop.f32.mrf.mxu0
    %v720 = vadd.f32 %v652, %v719
    %v721 = vpop.f32.mrf.mxu0
    %v722 = vadd.f32 %v652, %v721
    %723 = vmatprep.mubr.bf16.mxu0 0
    %724 = vmatmul.mubr.bf16.gmra.mxu0 %v679
    %v725 = vpop.f32.mrf.mxu0
    %v726 = vadd.f32 %v657, %v725
    %v727 = vpop.f32.mrf.mxu0
    %v728 = vadd.f32 %v657, %v727
    %v729 = vpop.f32.mrf.mxu0
    %v730 = vadd.f32 %v662, %v729
    %v731 = vpop.f32.mrf.mxu0
    %v732 = vadd.f32 %v662, %v731
    %733 = vdwg.mxu0
    %v734 = vmax.f32 %v716, 0.0
    %v735 = vmax.f32 %v718, 0.0
    %v736 = vmax.f32 %v720, 0.0
    %v737 = vmax.f32 %v722, 0.0
    %v738 = vmax.f32 %v726, 0.0
    %v739 = vmax.f32 %v728, 0.0
    %v740 = vmax.f32 %v730, 0.0
    %v741 = vmax.f32 %v732, 0.0
    %v742 = vpack.c.bf16 %v736, %v734
    %v743 = vpack.c.bf16 %v737, %v735
    %v744 = vpack.c.bf16 %v740, %v738
    %v745 = vpack.c.bf16 %v741, %v739
    %v746 = vunpack.c.l.bf16 %v71
    %748 = vset.pattern.permute.xlu0 32
    %749 = vperm.xlu0 %748, %v746
    %v750 = vpop.permute.xlu0 %749
    %v753 = vsel %vm674, %v71, 0
    %755 = vmatprep.subr.bf16.mxu0 0
    %756 = vmatpush1.bf16.msra.mxu0 0
    %757 = vmatprep.subr.bf16.mxu0 0
    %758 = vmatpush1.bf16.msra.mxu0 0
    %759 = vmatprep.subr.bf16.mxu0 0
    %760 = vmatpush1.bf16.msra.mxu0 0
    %761 = vmatprep.subr.bf16.mxu0 0
    %762 = vmatpush1.bf16.msra.mxu0 0
    %763 = vmatprep.subr.bf16.mxu0 0
    %764 = vmatpush1.bf16.msra.mxu0 0
    %765 = vmatprep.subr.bf16.mxu0 0
    %766 = vmatpush1.bf16.msra.mxu0 0
    %767 = vmatprep.subr.bf16.mxu0 %v745
    %768 = vmatpush1.bf16.msra.mxu0 %v744
    %769 = vmatprep.subr.bf16.mxu0 %v743
    %770 = vmatpush1.bf16.msra.mxu0 %v742
    %771 = vmatprep.subr.bf16.mxu0 0
    %772 = vmatpush2.bf16.msra.mxu0 0
    %773 = vmatprep.subr.bf16.mxu0 0
    %774 = vmatpush2.bf16.msra.mxu0 0
    %775 = vmatprep.subr.bf16.mxu0 0
    %776 = vmatpush2.bf16.msra.mxu0 0
    %777 = vmatprep.subr.bf16.mxu0 0
    %778 = vmatpush2.bf16.msra.mxu0 0
    %779 = vmatprep.subr.bf16.mxu0 0
    %780 = vmatpush2.bf16.msra.mxu0 0
    %781 = vmatprep.subr.bf16.mxu0 0
    %782 = vmatpush2.bf16.msra.mxu0 0
    %783 = vmatprep.subr.bf16.mxu0 0
    %784 = vmatpush2.bf16.msra.mxu0 0
    %785 = vmatprep.subr.bf16.mxu0 0
    %786 = vmatpush2.bf16.msra.mxu0 0
    %787 = vmatprep.mubr.bf16.mxu0 0
    %788 = vmatmul.mubr.bf16.gmra.mxu0 %v753
    %v789 = vpop.f32.mrf.mxu0
    %v790 = vadd.f32 %v750, %v789
    %v791 = vpop.f32.mrf.mxu0
    %v792 = vadd.f32 %v750, %v791
    %v793 = vpop.f32.mrf.mxu0
    %v794 = vpop.f32.mrf.mxu0
    %795 = vdwg.mxu0
    %v798 = vcombine.low %v790, %v792
    %v800 = vunpack.c.l.s4 1966171168
    %v801 = vunpack.c.0.s8 %v800
    %v802 = vlaneseq
    %v803 = vshrl.u32 %v802, 7
    %v804 = vsub.s32 %v801, %v803
    %v805 = vrot.slane %v798, %v804
    %v807 = vunpack.c.l.s4 1966171168
    %v808 = vunpack.c.0.s8 %v807
    %v809 = vlaneseq
    %v810 = vshrl.u32 %v809, 7
    %v811 = vsub.s32 %v808, %v810
    %v812 = vrot.slane %v805, %v811
    %v814 = vlaneseq
    %vm815 = vcmp.ge.s32.totalorder %v814, 0
    %vm816 = vcmp.lt.s32.totalorder %v814, 256
    %vm817 = vmand %vm815, %vm816
    %818 = vst.msk [vmem:[#allocation8] sm:$0x3] %vm817, %v812
    // Predicated region
    $region18: #{tpu_custom_call.1} parent=1 // pred_check
      _
    $region19: #{tpu_custom_call.1} parent=1 // pred_check_branch
      %820 = sbr.rel (0) target = $region21
    $region20: #{tpu_custom_call.1} parent=1 // pred_region
      %s822 = ssub.s32 32, 32
      %823 = vsyncadd [#allocation5], %s822
      %s825 = sshll.u32 [#allocation8], 4
      %s826 = int_to_ptr.vmem [resolvable:$true] %s825
      %828 = dma.vmem_to_hbm [thread:$0]  %s826, 32, %s2, [#allocation5]
    $region21: #{tpu_custom_call.1} parent=1 // pred_fallthru
      _
    // Predicated region
    $region22: #{tpu_custom_call.1} parent=1 // pred_check
      _
    $region23: #{tpu_custom_call.1} parent=1 // pred_check_branch
      %830 = sbr.rel (0) target = $region25
    $region24: #{tpu_custom_call.1} parent=1 // pred_region
      %831 = dma.done [#allocation5], 32
    $region25: #{tpu_custom_call.1} parent=1 // pred_fallthru
      _
    %832 = vsyncpa [#allocation4], 1
    %833 = vsyncpa [#allocation7], 1
    %834 = vsyncpa [#allocation5], 1

</llo_original>
